<compile_context>
chip_gen: v7x
topology: tpu7x:2x2x1
jax: 0.10.0
libtpu: 0.0.40
codegen_flags: <defaults>
</compile_context>

<pallas_src>
import functools

import jax
import jax.numpy as jnp
from jax.experimental import pallas as pl
from jax.experimental.pallas import tpu as pltpu


# ----------------------------- Pallas kernel ------------------------------- #
def _crop_resize_kernel(box_ind_ref, wy_ref, wxt_ref, img_ref, out_ref, *,
                        extrapolation_value):
    # wy_ref:  (1, crop_h, H)   row interpolation weights for this box
    # wxt_ref: (1, W, crop_w)   column interpolation weights (transposed)
    # img_ref: (1, C, H, W)     image selected via box_ind (scalar prefetch)
    # out_ref: (1, C, crop_h, crop_w)
    del box_ind_ref  # only consumed by the image BlockSpec index_map
    wy = wy_ref[0]                      # (crop_h, H)
    wxt = wxt_ref[0]                    # (W, crop_w)
    c, h, w = img_ref.shape[1], img_ref.shape[2], img_ref.shape[3]
    crop_h = wy.shape[0]
    crop_w = wxt.shape[1]

    # --- column interpolation: ONE fused MXU matmul over all channels -------- #
    # (C, H, W) -> (C*H, W) keeps W as the lane dim (free view, H % 8 == 0).
    img2 = img_ref[0].reshape(c * h, w)
    t = jnp.dot(img2, wxt, preferred_element_type=jnp.float32)     # (C*H, crop_w)

    # --- row interpolation: ONE batched-over-C matmul ------------------------ #
    t3 = t.reshape(c, h, crop_w)                                    # major split, free
    wy_b = jnp.broadcast_to(wy.astype(jnp.float32)[None], (c, crop_h, h))
    r = jnp.einsum('cph,chq->cpq', wy_b, t3,
                   preferred_element_type=jnp.float32)              # (C, crop_h, crop_w)

    # --- extrapolation for out-of-image sample positions --------------------- #
    # Weight rows/cols of invalid sample positions are exactly zero, valid ones
    # sum to ~1, so the validity mask is recovered from the weights themselves;
    # no extra (nb, crop_h, crop_w) stream from HBM.
    vy = jnp.sum(wy.astype(jnp.float32), axis=-1, keepdims=True)    # (crop_h, 1)
    vx = jnp.sum(wxt.astype(jnp.float32), axis=0, keepdims=True)    # (1, crop_w)
    valid = (vy * vx) > 0.25                                        # (crop_h, crop_w)
    out = jnp.where(valid[None], r, jnp.float32(extrapolation_value))
    out_ref[0] = out.astype(out_ref.dtype)


# --------------------------- weight construction --------------------------- #
def _make_interp_weights(lo, hi, crop_size, img_size):
    """(num_boxes, crop_size, img_size) bilinear weights, TF crop_and_resize semantics.

    Rows for sample positions that fall outside the image are exactly zero; the
    kernel derives the extrapolation mask from this property.
    """
    lo = lo.astype(jnp.float32)
    hi = hi.astype(jnp.float32)
    if crop_size > 1:
        scale = (hi - lo) * (img_size - 1) / (crop_size - 1)
        pos = lo[:, None] * (img_size - 1) + (
            jnp.arange(crop_size, dtype=jnp.float32)[None, :] * scale[:, None])
    else:
        pos = (0.5 * (lo + hi) * (img_size - 1))[:, None] * jnp.ones(
            (1, crop_size), jnp.float32)
    valid = (pos >= 0.0) & (pos <= img_size - 1)
    top = jnp.floor(pos)
    bottom = jnp.ceil(pos)
    lerp = pos - top
    w = (1.0 - lerp)[..., None] * jax.nn.one_hot(
        top.astype(jnp.int32), img_size, dtype=jnp.float32
    ) + lerp[..., None] * jax.nn.one_hot(
        bottom.astype(jnp.int32), img_size, dtype=jnp.float32)
    w = w * valid[..., None].astype(jnp.float32)
    return w


# ------------------------------- wrapper ----------------------------------- #
@functools.partial(jax.jit, static_argnames=("crop_height", "crop_width",
                                             "extrapolation_value"))
def crop_and_resize(image, boxes, box_ind, crop_height, crop_width,
                    extrapolation_value=0.0):
    n, c, h, w = image.shape
    nb = boxes.shape[0]

    # Sort boxes by batch index: consecutive grid steps that share an image map
    # to the same image block index, so Pallas skips the redundant HBM->VMEM
    # image DMA (O(N) image transfers instead of O(num_boxes)).
    box_ind = box_ind.astype(jnp.int32)
    perm = jnp.argsort(box_ind)
    inv_perm = jnp.argsort(perm)
    boxes_s = boxes[perm]
    box_ind_s = box_ind[perm]

    y1, x1, y2, x2 = boxes_s[:, 0], boxes_s[:, 1], boxes_s[:, 2], boxes_s[:, 3]
    wy = _make_interp_weights(y1, y2, crop_height, h)        # (nb, crop_h, H)
    wx = _make_interp_weights(x1, x2, crop_width, w)         # (nb, crop_w, W)
    wxt = jnp.transpose(wx, (0, 2, 1))                       # (nb, W, crop_w)
    # Explicit operand dtypes for the MXU matmuls (no silent mixed-dtype dots).
    wy = wy.astype(image.dtype)
    wxt = wxt.astype(image.dtype)

    kernel = functools.partial(_crop_resize_kernel,
                               extrapolation_value=float(extrapolation_value))

    grid_spec = pltpu.PrefetchScalarGridSpec(
        num_scalar_prefetch=1,
        grid=(nb,),
        in_specs=[
            pl.BlockSpec((1, crop_height, h), lambda b, bi: (b, 0, 0)),
            pl.BlockSpec((1, w, crop_width), lambda b, bi: (b, 0, 0)),
            pl.BlockSpec((1, c, h, w), lambda b, bi: (bi[b], 0, 0, 0)),
        ],
        out_specs=pl.BlockSpec((1, c, crop_height, crop_width),
                               lambda b, bi: (b, 0, 0, 0)),
    )

    out_s = pl.pallas_call(
        kernel,
        out_shape=jax.ShapeDtypeStruct((nb, c, crop_height, crop_width),
                                       image.dtype),
        grid_spec=grid_spec,
        compiler_params=pltpu.CompilerParams(
            # Boxes are independent -> v7x may shard the box loop over both TCs.
            dimension_semantics=("parallel",),
            # Explicit VMEM budget for the double-buffered image block + weights
            # + output; re-derive when scaling C/H/W (v7x physical VMEM = 64 MiB).
            vmem_limit_bytes=32 * 1024 * 1024,
        ),
    )(box_ind_s, wy, wxt, image)

    # Undo the box sort.
    return out_s[inv_perm]


# ----------------------------- pure-JAX reference --------------------------- #
def _reference(image, boxes, box_ind, crop_h, crop_w, extrap):
    n, c, h, w = image.shape

    def one(box, bi):
        y1, x1, y2, x2 = box[0], box[1], box[2], box[3]
        if crop_h > 1:
            in_y = y1 * (h - 1) + jnp.arange(crop_h, dtype=jnp.float32) * (
                (y2 - y1) * (h - 1) / (crop_h - 1))
        else:
            in_y = 0.5 * (y1 + y2) * (h - 1) * jnp.ones((crop_h,), jnp.float32)
        if crop_w > 1:
            in_x = x1 * (w - 1) + jnp.arange(crop_w, dtype=jnp.float32) * (
                (x2 - x1) * (w - 1) / (crop_w - 1))
        else:
            in_x = 0.5 * (x1 + x2) * (w - 1) * jnp.ones((crop_w,), jnp.float32)
        vy = (in_y >= 0) & (in_y <= h - 1)
        vx = (in_x >= 0) & (in_x <= w - 1)
        ty = jnp.clip(jnp.floor(in_y), 0, h - 1).astype(jnp.int32)
        by = jnp.clip(jnp.ceil(in_y), 0, h - 1).astype(jnp.int32)
        ly = in_y - jnp.floor(in_y)
        tx = jnp.clip(jnp.floor(in_x), 0, w - 1).astype(jnp.int32)
        bx = jnp.clip(jnp.ceil(in_x), 0, w - 1).astype(jnp.int32)
        lx = in_x - jnp.floor(in_x)
        img = image[bi]                                       # (C, H, W)
        tl = img[:, ty[:, None], tx[None, :]]
        tr = img[:, ty[:, None], bx[None, :]]
        bl = img[:, by[:, None], tx[None, :]]
        br = img[:, by[:, None], bx[None, :]]
        top = tl + (tr - tl) * lx[None, None, :]
        bot = bl + (br - bl) * lx[None, None, :]
        out = top + (bot - top) * ly[None, :, None]
        valid = vy[:, None] & vx[None, :]
        return jnp.where(valid[None], out, jnp.float32(extrap))

    return jax.vmap(one)(boxes, box_ind)


# ---------------------------------- main ------------------------------------ #
if __name__ == "__main__":
    key = jax.random.PRNGKey(0)
    k_img, k_box = jax.random.split(key)

    N, C, H, W = 2, 4, 16, 16
    crop_h, crop_w = 8, 8
    extrapolation_value = 0.5  # nonzero to exercise the extrapolation path

    image = jax.random.normal(k_img, (N, C, H, W), dtype=jnp.float32)
    # (y1, x1, y2, x2) normalized; last box deliberately extends past the image
    # to exercise the extrapolation path.  box_ind is unsorted to exercise the
    # sort/un-permute path.
    boxes = jnp.array(
        [
            [0.10, 0.15, 0.80, 0.90],
            [0.25, 0.30, 0.60, 0.55],
            [-0.20, 0.05, 1.20, 0.95],
        ],
        dtype=jnp.float32,
    )
    box_ind = jnp.array([0, 1, 0], dtype=jnp.int32)

    out = crop_and_resize(image, boxes, box_ind,
                          crop_height=crop_h, crop_width=crop_w,
                          extrapolation_value=extrapolation_value)
    out = jax.block_until_ready(out)

    ref = _reference(image, boxes, box_ind, crop_h, crop_w, extrapolation_value)
    assert out.shape == (boxes.shape[0], C, crop_h, crop_w)
    assert jnp.allclose(out, ref, atol=1e-5, rtol=1e-5), float(
        jnp.max(jnp.abs(out - ref)))

    print("KERNEL_OK")
</pallas_src>

<mosaic_0001>
module attributes {stable_mosaic.version = 11 : i64} {
  func.func @_crop_resize_kernel(%arg0: i32, %arg1: memref<3xi32, #tpu.memory_space<smem>>, %arg2: memref<1x8x16xf32, #tpu.memory_space<vmem>>, %arg3: memref<1x16x8xf32, #tpu.memory_space<vmem>>, %arg4: memref<1x4x16x16xf32, #tpu.memory_space<vmem>>, %arg5: memref<1x4x8x8xf32, #tpu.memory_space<vmem>>) attributes {dimension_semantics = [#tpu.dimension_semantics<parallel>], iteration_bounds = array<i64: 3>, scalar_prefetch = 1 : i64, scratch_operands = 0 : i64, tpu.core_type = #tpu.core_type<tc>, window_params = [{transform_indices = @transform_0, window_bounds = array<i64: 1, 8, 16>}, {transform_indices = @transform_1, window_bounds = array<i64: 1, 16, 8>}, {transform_indices = @transform_2, window_bounds = array<i64: 1, 4, 16, 16>}, {transform_indices = @transform_3, window_bounds = array<i64: 1, 4, 8, 8>}]} {
    %c0 = arith.constant 0 : index
    %c0_0 = arith.constant 0 : index
    %c0_1 = arith.constant 0 : index
    %0 = vector.load %arg2[%c0, %c0_0, %c0_1] : memref<1x8x16xf32, #tpu.memory_space<vmem>>, vector<1x8x16xf32>
    %1 = vector.shape_cast %0 : vector<1x8x16xf32> to vector<8x16xf32>
    %c0_2 = arith.constant 0 : index
    %c0_3 = arith.constant 0 : index
    %c0_4 = arith.constant 0 : index
    %2 = vector.load %arg3[%c0_2, %c0_3, %c0_4] : memref<1x16x8xf32, #tpu.memory_space<vmem>>, vector<1x16x8xf32>
    %3 = vector.shape_cast %2 : vector<1x16x8xf32> to vector<16x8xf32>
    %c0_5 = arith.constant 0 : index
    %c0_6 = arith.constant 0 : index
    %c0_7 = arith.constant 0 : index
    %c0_8 = arith.constant 0 : index
    %4 = vector.load %arg4[%c0_5, %c0_6, %c0_7, %c0_8] : memref<1x4x16x16xf32, #tpu.memory_space<vmem>>, vector<1x4x16x16xf32>
    %5 = vector.shape_cast %4 : vector<1x4x16x16xf32> to vector<4x16x16xf32>
    %6 = vector.shape_cast %5 : vector<4x16x16xf32> to vector<64x16xf32>
    %cst = arith.constant dense<0.000000e+00> : vector<64x8xf32>
    %7 = tpu.matmul %6, %3, %cst {dimension_numbers = #tpu.dot_dimension_numbers<[1], [0], [0], [1], [0, 0, 1, 1], [], []>} : vector<64x16xf32>, vector<16x8xf32>, vector<64x8xf32> -> vector<64x8xf32>
    %8 = vector.shape_cast %7 : vector<64x8xf32> to vector<4x16x8xf32>
    %9 = vector.shape_cast %1 : vector<8x16xf32> to vector<1x8x16xf32>
    %10 = vector.shape_cast %9 : vector<1x8x16xf32> to vector<1x8x16xf32>
    %11 = vector.broadcast %10 : vector<1x8x16xf32> to vector<4x8x16xf32>
    "tpu.trace_start"() <{level = 10 : i32, message = "cph,chq->cpq"}> : () -> ()
    %cst_9 = arith.constant dense<0.000000e+00> : vector<4x8x8xf32>
    %12 = tpu.matmul %11, %8, %cst_9 {dimension_numbers = #tpu.dot_dimension_numbers<[2], [1], [1], [2], [0, 0, 0, 1, 1, 2], [0], [0]>} : vector<4x8x16xf32>, vector<4x16x8xf32>, vector<4x8x8xf32> -> vector<4x8x8xf32>
    "tpu.trace_stop"() : () -> ()
    %cst_10 = arith.constant dense<0.000000e+00> : vector<8xf32>
    %13 = vector.multi_reduction <add>, %1, %cst_10 [1] : vector<8x16xf32> to vector<8xf32>
    %14 = vector.shape_cast %13 : vector<8xf32> to vector<8x1xf32>
    %cst_11 = arith.constant dense<0.000000e+00> : vector<8xf32>
    %15 = vector.multi_reduction <add>, %3, %cst_11 [0] : vector<16x8xf32> to vector<8xf32>
    %16 = vector.shape_cast %15 : vector<8xf32> to vector<1x8xf32>
    %17 = vector.broadcast %14 : vector<8x1xf32> to vector<8x8xf32>
    %18 = vector.broadcast %16 : vector<1x8xf32> to vector<8x8xf32>
    %19 = arith.mulf %17, %18 : vector<8x8xf32>
    %cst_12 = arith.constant 2.500000e-01 : f32
    %20 = vector.broadcast %cst_12 : f32 to vector<8x8xf32>
    %21 = arith.cmpf ogt, %19, %20 : vector<8x8xf32>
    %22 = vector.shape_cast %21 : vector<8x8xi1> to vector<1x8x8xi1>
    %cst_13 = arith.constant 5.000000e-01 : f32
    %23 = vector.shape_cast %22 : vector<1x8x8xi1> to vector<1x8x8xi1>
    %24 = vector.broadcast %23 : vector<1x8x8xi1> to vector<4x8x8xi1>
    %25 = vector.broadcast %cst_13 : f32 to vector<4x8x8xf32>
    %26 = arith.select %24, %12, %25 : vector<4x8x8xi1>, vector<4x8x8xf32>
    %c0_14 = arith.constant 0 : index
    %c0_15 = arith.constant 0 : index
    %c0_16 = arith.constant 0 : index
    %c0_17 = arith.constant 0 : index
    %27 = vector.load %arg5[%c0_14, %c0_15, %c0_16, %c0_17] : memref<1x4x8x8xf32, #tpu.memory_space<vmem>>, vector<1x4x8x8xf32>
    %28 = vector.shape_cast %27 : vector<1x4x8x8xf32> to vector<4x8x8xf32>
    %29 = vector.shape_cast %26 : vector<4x8x8xf32> to vector<1x4x8x8xf32>
    tpu.vector_store %arg5[%c0_14, %c0_15, %c0_16, %c0_17], %29 {strides = array<i32>} : memref<1x4x8x8xf32, #tpu.memory_space<vmem>>, vector<1x4x8x8xf32>,
    return
  }
  func.func @transform_0(%arg0: i32, %arg1: memref<3xi32, #tpu.memory_space<smem>>) -> (i32, i32, i32) {
    %c0_i32 = arith.constant 0 : i32
    %c0_i32_0 = arith.constant 0 : i32
    %c0_i32_1 = arith.constant 0 : i32
    return %arg0, %c0_i32, %c0_i32_0 : i32, i32, i32
  }
  func.func @transform_1(%arg0: i32, %arg1: memref<3xi32, #tpu.memory_space<smem>>) -> (i32, i32, i32) {
    %c0_i32 = arith.constant 0 : i32
    %c0_i32_0 = arith.constant 0 : i32
    %c0_i32_1 = arith.constant 0 : i32
    return %arg0, %c0_i32, %c0_i32_0 : i32, i32, i32
  }
  func.func @transform_2(%arg0: i32, %arg1: memref<3xi32, #tpu.memory_space<smem>>) -> (i32, i32, i32, i32) {
    %0 = arith.index_cast %arg0 : i32 to index
    %1 = memref.load %arg1[%0] : memref<3xi32, #tpu.memory_space<smem>>
    %c0_i32 = arith.constant 0 : i32
    %c0_i32_0 = arith.constant 0 : i32
    %c0_i32_1 = arith.constant 0 : i32
    %c0_i32_2 = arith.constant 0 : i32
    return %1, %c0_i32, %c0_i32_0, %c0_i32_1 : i32, i32, i32, i32
  }
  func.func @transform_3(%arg0: i32, %arg1: memref<3xi32, #tpu.memory_space<smem>>) -> (i32, i32, i32, i32) {
    %c0_i32 = arith.constant 0 : i32
    %c0_i32_0 = arith.constant 0 : i32
    %c0_i32_1 = arith.constant 0 : i32
    %c0_i32_2 = arith.constant 0 : i32
    return %arg0, %c0_i32, %c0_i32_0, %c0_i32_1 : i32, i32, i32, i32
  }
}

</mosaic_0001>

<llo_original>
// kernel: crop_and_resize.1
$region0: #{crop_and_resize.1}
  #allocation0 [shape = 'u32[]', space=smem, size = 0x4, offset = 0x4, fixed_abs, tag = 'smem constant byte address 0x4 - core index']
  #allocation1 [shape = 'u32[144,128]{1,0:T(1,128)}', space=vmem, size = 0x12000, scoped, tag = 'internal scratch']
  #allocation2 [shape = 's32[1]{0}', space=sflag, size = 0x4, scoped, tag = 'scoped memory for crop_and_resize.1']
  #allocation3 [shape = 'u8[512]{0}', space=smem, size = 0x200, scoped, tag = 'prefetched SMEM operand 0']
  %s0 = inlined_call_operand.vmem [shape: s32[3], index: 0, kind: input, shape index: {}]
  %s1 = inlined_call_operand.vmem [shape: f32[3,8,16], index: 1, kind: input, shape index: {}]
  %s2 = inlined_call_operand.vmem [shape: f32[3,16,8], index: 2, kind: input, shape index: {}]
  %s3 = inlined_call_operand.vmem [shape: f32[2,4,16,16], index: 3, kind: input, shape index: {}]
  %s4 = inlined_call_operand.vmem [shape: f32[3,4,8,8], index: 4, kind: output, shape index: {}]
  %s5 = sld [smem:[#allocation0]]
  $region45: #{crop_and_resize.1} parent=0
    _
  %s7 = ssub.s32 1, %s5
  %s8 = scalar_select 0, %s7, %s5
  %s9 = sshll.u32 %s0, 4
  %s10 = int_to_ptr.vmem [resolvable:$true] %s9
  %12 = dma.vmem_to_smem %s10, 16, [#allocation3], [#allocation2]
  %13 = dma.done [#allocation2], 16
  %14 = sfence
  loop: start=0, step=1, limit=5
  $region2: #{crop_and_resize.1} parent=0 // loop_pre_header
    _
  $region3: #{crop_and_resize.1} parent=0 // loop_header
    %s16 = sphi 0, %s20
    %p17 = scmp.ge.s32.totalorder %s16, 5
    %s26 = sphi 0, %s28
    %s29 = sphi 0, %s26
    %s30 = sphi 0, %s29
    %s46 = sphi 0, %s30
    %s52 = sphi 0, %s54
    %s55 = sphi 0, %s52
    %s56 = sphi 0, %s55
    %s72 = sphi 0, %s56
    %s80 = sphi 0, %s82
    %s83 = sphi 0, %s80
    %s84 = sphi 0, %s83
    %s100 = sphi 0, %s84
    %s106 = sphi 0, %s108
    %s109 = sphi 0, %s106
    %s110 = sphi 0, %s109
    %s126 = sphi 0, %s110
  $region4: #{crop_and_resize.1} parent=0 // loop_header_branch
    %19 = sbr.rel (%p17) target = $region8
  $region5: #{crop_and_resize.1} parent=0 // loop_body
    %s21 = ssub.s32 %s16, 1
    %s22 = ssub.s32 %s16, 2
    %s23 = sadd.s32 %s16, 1
    %s24 = ssub.s32 %s16, %s23
    %p25 = scmp.eq.s32.totalorder %s24, 0
    %s27 = sadd.s32 %s26, 1
    %s28 = scalar_select %p25, %s26, %s27
    %p31 = pneg %p25
    %p32 = scmp.eq.s32.totalorder %s16, 2
    %p33 = por %p31, %p32
    %p34 = scmp.ne.s32.totalorder %s26, %s29
    %p35 = scmp.eq.s32.totalorder %s16, 0
    %p36 = por %p34, %p35
    %p37 = scmp.ne.s32.totalorder %s26, %s29
    %p38 = scmp.eq.s32.totalorder %s21, 2
    %p39 = por %p37, %p38
    %p40 = scmp.ne.s32.totalorder %s29, %s30
    %p41 = scmp.eq.s32.totalorder %s21, 0
    %p42 = por %p40, %p41
    %p43 = scmp.ne.s32.totalorder %s29, %s30
    %p44 = scmp.eq.s32.totalorder %s22, 2
    %p45 = por %p43, %p44
    %p47 = scmp.ne.s32.totalorder %s30, %s46
    %p48 = scmp.eq.s32.totalorder %s22, 0
    %p49 = por %p47, %p48
    %s50 = ssub.s32 %s16, %s23
    %p51 = scmp.eq.s32.totalorder %s50, 0
    %s53 = sadd.s32 %s52, 1
    %s54 = scalar_select %p51, %s52, %s53
    %p57 = pneg %p51
    %p58 = scmp.eq.s32.totalorder %s16, 2
    %p59 = por %p57, %p58
    %p60 = scmp.ne.s32.totalorder %s52, %s55
    %p61 = scmp.eq.s32.totalorder %s16, 0
    %p62 = por %p60, %p61
    %p63 = scmp.ne.s32.totalorder %s52, %s55
    %p64 = scmp.eq.s32.totalorder %s21, 2
    %p65 = por %p63, %p64
    %p66 = scmp.ne.s32.totalorder %s55, %s56
    %p67 = scmp.eq.s32.totalorder %s21, 0
    %p68 = por %p66, %p67
    %p69 = scmp.ne.s32.totalorder %s55, %s56
    %p70 = scmp.eq.s32.totalorder %s22, 2
    %p71 = por %p69, %p70
    %p73 = scmp.ne.s32.totalorder %s56, %s72
    %p74 = scmp.eq.s32.totalorder %s22, 0
    %p75 = por %p73, %p74
    %s76 = sld [smem:[#allocation3 + %s16]]
    %s77 = sld [smem:[#allocation3 + %s23]]
    %s78 = ssub.s32 %s76, %s77
    %p79 = scmp.eq.s32.totalorder %s78, 0
    %s81 = sadd.s32 %s80, 1
    %s82 = scalar_select %p79, %s80, %s81
    %p85 = pneg %p79
    %p86 = scmp.eq.s32.totalorder %s16, 2
    %p87 = por %p85, %p86
    %p88 = scmp.ne.s32.totalorder %s80, %s83
    %p89 = scmp.eq.s32.totalorder %s16, 0
    %p90 = por %p88, %p89
    %p91 = scmp.ne.s32.totalorder %s80, %s83
    %p92 = scmp.eq.s32.totalorder %s21, 2
    %p93 = por %p91, %p92
    %p94 = scmp.ne.s32.totalorder %s83, %s84
    %p95 = scmp.eq.s32.totalorder %s21, 0
    %p96 = por %p94, %p95
    %p97 = scmp.ne.s32.totalorder %s83, %s84
    %p98 = scmp.eq.s32.totalorder %s22, 2
    %p99 = por %p97, %p98
    %p101 = scmp.ne.s32.totalorder %s84, %s100
    %p102 = scmp.eq.s32.totalorder %s22, 0
    %p103 = por %p101, %p102
    %s104 = ssub.s32 %s16, %s23
    %p105 = scmp.eq.s32.totalorder %s104, 0
    %s107 = sadd.s32 %s106, 1
    %s108 = scalar_select %p105, %s106, %s107
    %p111 = pneg %p105
    %p112 = scmp.eq.s32.totalorder %s16, 2
    %p113 = por %p111, %p112
    %p114 = scmp.ne.s32.totalorder %s106, %s109
    %p115 = scmp.eq.s32.totalorder %s16, 0
    %p116 = por %p114, %p115
    %p117 = scmp.ne.s32.totalorder %s106, %s109
    %p118 = scmp.eq.s32.totalorder %s21, 2
    %p119 = por %p117, %p118
    %p120 = scmp.ne.s32.totalorder %s109, %s110
    %p121 = scmp.eq.s32.totalorder %s21, 0
    %p122 = por %p120, %p121
    %p123 = scmp.ne.s32.totalorder %s109, %s110
    %p124 = scmp.eq.s32.totalorder %s22, 2
    %p125 = por %p123, %p124
    %p127 = scmp.ne.s32.totalorder %s110, %s126
    %p128 = scmp.eq.s32.totalorder %s22, 0
    %p129 = por %p127, %p128
    %p130 = scmp.le.s32.totalorder 1, %s16
    %p131 = scmp.lt.s32.totalorder %s16, 4
    %p132 = pnand %p130, %p131
    %p133 = pneg %p132
    // Predicated region
    $region9: #{crop_and_resize.1} parent=5 // pred_check
      _
    $region10: #{crop_and_resize.1} parent=5 // pred_check_branch
      %135 = sbr.rel (%p132) target = $region12
    $region11: #{crop_and_resize.1} parent=5 // pred_region
      %s136 = ssub.s32 %s16, 1
    $region12: #{crop_and_resize.1} parent=5 // pred_fallthru
      _
    %p137 = scmp.lt.s32.totalorder %s16, 3
    // Predicated region
    $region13: #{crop_and_resize.1} parent=5 // pred_check
      %p138 = pneg %p137
    $region14: #{crop_and_resize.1} parent=5 // pred_check_branch
      %140 = sbr.rel (%p138) target = $region16
    $region15: #{crop_and_resize.1} parent=5 // pred_region
      // Predicated region
      $region17: #{crop_and_resize.1} parent=15 // pred_check
        %p141 = pneg %p36
      $region18: #{crop_and_resize.1} parent=15 // pred_check_branch
        %143 = sbr.rel (%p141) target = $region20
      $region19: #{crop_and_resize.1} parent=15 // pred_region
        %p144 = scmp.lt.s32.totalorder %s16, 2
        %s145 = scalar_select %p144, %s16, 2
        %s146 = smul.addr %s145, 8
        %s147 = scalar_lea.vmem %s1, %s146
      $region20: #{crop_and_resize.1} parent=15 // pred_fallthru
        _
      // Predicated region
      $region21: #{crop_and_resize.1} parent=15 // pred_check
        %p148 = pneg %p62
      $region22: #{crop_and_resize.1} parent=15 // pred_check_branch
        %150 = sbr.rel (%p148) target = $region24
      $region23: #{crop_and_resize.1} parent=15 // pred_region
        %p151 = scmp.lt.s32.totalorder %s16, 2
        %s152 = scalar_select %p151, %s16, 2
        %s153 = smul.addr %s152, 2
        %s154 = smul.addr %s153, 8
        %s155 = scalar_lea.vmem %s2, %s154
      $region24: #{crop_and_resize.1} parent=15 // pred_fallthru
        _
      // Predicated region
      $region25: #{crop_and_resize.1} parent=15 // pred_check
        %p156 = pneg %p90
      $region26: #{crop_and_resize.1} parent=15 // pred_check_branch
        %158 = sbr.rel (%p156) target = $region28
      $region27: #{crop_and_resize.1} parent=15 // pred_region
        %s159 = sld [smem:[#allocation3 + %s16]]
        %p160 = scmp.lt.s32.totalorder %s159, 1
        %s161 = scalar_select %p160, %s159, 1
        %s162 = smul.addr %s161, 8
        %s163 = smul.addr %s162, 8
        %s164 = scalar_lea.vmem %s3, %s163
        %s165 = sld [smem:[#allocation3 + %s16]]
      $region28: #{crop_and_resize.1} parent=15 // pred_fallthru
        _
    $region16: #{crop_and_resize.1} parent=5 // pred_fallthru
      _
    %p166 = scmp.le.s32.totalorder 1, %s16
    %p167 = scmp.lt.s32.totalorder %s16, 4
    %p168 = pnand %p166, %p167
    %p169 = pneg %p168
    // Predicated region
    $region29: #{crop_and_resize.1} parent=5 // pred_check
      _
    $region30: #{crop_and_resize.1} parent=5 // pred_check_branch
      %171 = sbr.rel (%p168) target = $region32
    $region31: #{crop_and_resize.1} parent=5 // pred_region
      %s172 = ssub.s32 %s16, 1
      %p173 = scmp.lt.s32.totalorder %s21, 2
      %s174 = scalar_select %p173, %s21, 2
      %s175 = smul.addr %s174, 8
      %s176 = scalar_lea.vmem %s1, %s175
      %p177 = pneg %p42
      %p178 = pneg %p39
      %p179 = scmp.lt.s32.totalorder %s21, 2
      %s180 = scalar_select %p179, %s21, 2
      %s181 = smul.addr %s180, 2
      %s182 = smul.addr %s181, 8
      %s183 = scalar_lea.vmem %s2, %s182
      %p184 = pneg %p68
      %p185 = pneg %p65
      %s186 = sld [smem:[#allocation3 + %s21]]
      %p187 = scmp.lt.s32.totalorder %s186, 1
      %s188 = scalar_select %p187, %s186, 1
      %s189 = smul.addr %s188, 8
      %s190 = smul.addr %s189, 8
      %s191 = scalar_lea.vmem %s3, %s190
      %p192 = pneg %p96
      %p193 = pneg %p93
      %p194 = pneg %p122
      %p195 = pneg %p119
      %p196 = scmp.lt.s32.totalorder %s21, 2
      %s197 = scalar_select %p196, %s21, 2
      %s198 = smul.addr %s197, 4
      %s199 = smul.addr %s198, 8
      %s200 = scalar_lea.vmem %s4, %s199
      %p201 = scmp.lt.s32.totalorder %s21, 2
      %s202 = scalar_select %p201, %s21, 2
      %s203 = smul.addr %s202, 8
      %s204 = scalar_lea.vmem %s1, %s203
      %p205 = scmp.lt.s32.totalorder %s21, 2
      %s206 = scalar_select %p205, %s21, 2
      %s207 = smul.addr %s206, 2
      %s208 = smul.addr %s207, 8
      %s209 = scalar_lea.vmem %s2, %s208
      %s210 = sld [smem:[#allocation3 + %s21]]
      %p211 = scmp.lt.s32.totalorder %s210, 1
      %s212 = scalar_select %p211, %s210, 1
      %s213 = smul.addr %s212, 8
      %s214 = smul.addr %s213, 8
      %s215 = scalar_lea.vmem %s3, %s214
      %s216 = sld [smem:[#allocation3 + %s21]]
      %p217 = scmp.lt.s32.totalorder %s21, 2
      %s218 = scalar_select %p217, %s21, 2
      %s219 = smul.addr %s218, 4
      %s220 = smul.addr %s219, 8
      %s221 = scalar_lea.vmem %s4, %s220
      %v222 = vld [vmem:[%s204] sm:$0xff]
      %v223 = vld [vmem:[%s209] sm:$0xff]
      %v224 = vld [vmem:[%s209 + $0x8] sm:$0xff]
      %v225 = vld [vmem:[%s215] sm:$0xff]
      %v226 = vld [vmem:[%s215 + $0x8] sm:$0xff]
      %v227 = vld [vmem:[%s215 + $0x10] sm:$0xff]
      %v228 = vld [vmem:[%s215 + $0x18] sm:$0xff]
      %v229 = vld [vmem:[%s215 + $0x20] sm:$0xff]
      %v230 = vld [vmem:[%s215 + $0x28] sm:$0xff]
      %v231 = vld [vmem:[%s215 + $0x30] sm:$0xff]
      %v232 = vld [vmem:[%s215 + $0x38] sm:$0xff]
      %vm233 = vcmask 130048
      %v235 = vsel %vm233, %v225, 0
      %v238 = vsel %vm233, %v226, 0
      %v241 = vsel %vm233, %v227, 0
      %v244 = vsel %vm233, %v228, 0
      %v247 = vsel %vm233, %v229, 0
      %v250 = vsel %vm233, %v230, 0
      %v253 = vsel %vm233, %v231, 0
      %v256 = vsel %vm233, %v232, 0
      %258 = vmatprep.subr.mxu0 0.0
      %259 = vmatpush1.msra.mxu0 %v223
      %260 = vmatprep.subr.mxu0 0.0
      %261 = vmatpush1.msra.mxu0 %v224
      %262 = vmatprep.subr.mxu0 0.0
      %263 = vmatpush1.msra.mxu0 0.0
      %264 = vmatprep.subr.mxu0 0.0
      %265 = vmatpush1.msra.mxu0 0.0
      %266 = vmatprep.subr.mxu0 0.0
      %267 = vmatpush1.msra.mxu0 0.0
      %268 = vmatprep.subr.mxu0 0.0
      %269 = vmatpush1.msra.mxu0 0.0
      %270 = vmatprep.subr.mxu0 0.0
      %271 = vmatpush1.msra.mxu0 0.0
      %272 = vmatprep.subr.mxu0 0.0
      %273 = vmatpush1.msra.mxu0 0.0
      %274 = vmatprep.subr.mxu0 0.0
      %275 = vmatpush1.msra.mxu0 0.0
      %276 = vmatprep.subr.mxu0 0.0
      %277 = vmatpush1.msra.mxu0 0.0
      %278 = vmatprep.subr.mxu0 0.0
      %279 = vmatpush1.msra.mxu0 0.0
      %280 = vmatprep.subr.mxu0 0.0
      %281 = vmatpush1.msra.mxu0 0.0
      %282 = vmatprep.subr.mxu0 0.0
      %283 = vmatpush1.msra.mxu0 0.0
      %284 = vmatprep.subr.mxu0 0.0
      %285 = vmatpush1.msra.mxu0 0.0
      %286 = vmatprep.subr.mxu0 0.0
      %287 = vmatpush1.msra.mxu0 0.0
      %288 = vmatprep.subr.mxu0 0.0
      %289 = vmatpush1.msra.mxu0 0.0
      %290 = vmatprep.subr.mxu0 0.0
      %291 = vmatpush1.msra.mxu0 0.0
      %292 = vmatprep.subr.mxu0 0.0
      %293 = vmatpush1.msra.mxu0 0.0
      %294 = vmatprep.subr.mxu0 0.0
      %295 = vmatpush1.msra.mxu0 0.0
      %296 = vmatprep.subr.mxu0 0.0
      %297 = vmatpush1.msra.mxu0 0.0
      %298 = vmatprep.subr.mxu0 0.0
      %299 = vmatpush1.msra.mxu0 0.0
      %300 = vmatprep.subr.mxu0 0.0
      %301 = vmatpush1.msra.mxu0 0.0
      %302 = vmatprep.subr.mxu0 0.0
      %303 = vmatpush1.msra.mxu0 0.0
      %304 = vmatprep.subr.mxu0 0.0
      %305 = vmatpush1.msra.mxu0 0.0
      %306 = vmatprep.subr.mxu0 0.0
      %307 = vmatpush1.msra.mxu0 0.0
      %308 = vmatprep.subr.mxu0 0.0
      %309 = vmatpush1.msra.mxu0 0.0
      %310 = vmatprep.subr.mxu0 0.0
      %311 = vmatpush1.msra.mxu0 0.0
      %312 = vmatprep.subr.mxu0 0.0
      %313 = vmatpush1.msra.mxu0 0.0
      %314 = vmatprep.subr.mxu0 0.0
      %315 = vmatpush1.msra.mxu0 0.0
      %316 = vmatprep.subr.mxu0 0.0
      %317 = vmatpush1.msra.mxu0 0.0
      %318 = vmatprep.subr.mxu0 0.0
      %319 = vmatpush1.msra.mxu0 0.0
      %320 = vmatprep.subr.mxu0 0.0
      %321 = vmatpush1.msra.mxu0 0.0
      %322 = vmatprep.mubr.f32.mxu0 0.0
      %323 = vmatmul.mubr.f32.gmra.mrb[0].mxu0 %v235
      %v324 = vpop.f32.mrb[0].mxu0
      %v325 = vadd.f32 0.0, %v324
      %v326 = vpop.f32.mrb[0].mxu0
      %327 = vmatprep.mubr.f32.mxu0 0.0
      %328 = vmatmul.mubr.f32.gmra.mrb[0].mxu0 %v238
      %v329 = vpop.f32.mrb[0].mxu0
      %v330 = vadd.f32 0.0, %v329
      %v331 = vpop.f32.mrb[0].mxu0
      %332 = vmatprep.mubr.f32.mxu0 0.0
      %333 = vmatmul.mubr.f32.gmra.mrb[0].mxu0 %v241
      %v334 = vpop.f32.mrb[0].mxu0
      %v335 = vadd.f32 0.0, %v334
      %v336 = vpop.f32.mrb[0].mxu0
      %337 = vmatprep.mubr.f32.mxu0 0.0
      %338 = vmatmul.mubr.f32.gmra.mrb[0].mxu0 %v244
      %v339 = vpop.f32.mrb[0].mxu0
      %v340 = vadd.f32 0.0, %v339
      %v341 = vpop.f32.mrb[0].mxu0
      %342 = vmatprep.mubr.f32.mxu0 0.0
      %343 = vmatmul.mubr.f32.gmra.mrb[0].mxu0 %v247
      %v344 = vpop.f32.mrb[0].mxu0
      %v345 = vadd.f32 0.0, %v344
      %v346 = vpop.f32.mrb[0].mxu0
      %347 = vmatprep.mubr.f32.mxu0 0.0
      %348 = vmatmul.mubr.f32.gmra.mrb[0].mxu0 %v250
      %v349 = vpop.f32.mrb[0].mxu0
      %v350 = vadd.f32 0.0, %v349
      %v351 = vpop.f32.mrb[0].mxu0
      %352 = vmatprep.mubr.f32.mxu0 0.0
      %353 = vmatmul.mubr.f32.gmra.mrb[0].mxu0 %v253
      %v354 = vpop.f32.mrb[0].mxu0
      %v355 = vadd.f32 0.0, %v354
      %v356 = vpop.f32.mrb[0].mxu0
      %357 = vmatprep.mubr.f32.mxu0 0.0
      %358 = vmatmul.mubr.f32.gmra.mrb[0].mxu0 %v256
      %v359 = vpop.f32.mrb[0].mxu0
      %v360 = vadd.f32 0.0, %v359
      %v361 = vpop.f32.mrb[0].mxu0
      %362 = vdwg.mxu0
      %v364 = vsel %vm233, %v222, 0
      %366 = vmatprep.subr.mxu0 0.0
      %367 = vmatpush1.msra.mxu0 %v325
      %368 = vmatprep.subr.mxu0 0.0
      %369 = vmatpush1.msra.mxu0 %v330
      %370 = vmatprep.subr.mxu0 0.0
      %371 = vmatpush1.msra.mxu0 0.0
      %372 = vmatprep.subr.mxu0 0.0
      %373 = vmatpush1.msra.mxu0 0.0
      %374 = vmatprep.subr.mxu0 0.0
      %375 = vmatpush1.msra.mxu0 0.0
      %376 = vmatprep.subr.mxu0 0.0
      %377 = vmatpush1.msra.mxu0 0.0
      %378 = vmatprep.subr.mxu0 0.0
      %379 = vmatpush1.msra.mxu0 0.0
      %380 = vmatprep.subr.mxu0 0.0
      %381 = vmatpush1.msra.mxu0 0.0
      %382 = vmatprep.subr.mxu0 0.0
      %383 = vmatpush1.msra.mxu0 0.0
      %384 = vmatprep.subr.mxu0 0.0
      %385 = vmatpush1.msra.mxu0 0.0
      %386 = vmatprep.subr.mxu0 0.0
      %387 = vmatpush1.msra.mxu0 0.0
      %388 = vmatprep.subr.mxu0 0.0
      %389 = vmatpush1.msra.mxu0 0.0
      %390 = vmatprep.subr.mxu0 0.0
      %391 = vmatpush1.msra.mxu0 0.0
      %392 = vmatprep.subr.mxu0 0.0
      %393 = vmatpush1.msra.mxu0 0.0
      %394 = vmatprep.subr.mxu0 0.0
      %395 = vmatpush1.msra.mxu0 0.0
      %396 = vmatprep.subr.mxu0 0.0
      %397 = vmatpush1.msra.mxu0 0.0
      %398 = vmatprep.subr.mxu0 0.0
      %399 = vmatpush1.msra.mxu0 0.0
      %400 = vmatprep.subr.mxu0 0.0
      %401 = vmatpush1.msra.mxu0 0.0
      %402 = vmatprep.subr.mxu0 0.0
      %403 = vmatpush1.msra.mxu0 0.0
      %404 = vmatprep.subr.mxu0 0.0
      %405 = vmatpush1.msra.mxu0 0.0
      %406 = vmatprep.subr.mxu0 0.0
      %407 = vmatpush1.msra.mxu0 0.0
      %408 = vmatprep.subr.mxu0 0.0
      %409 = vmatpush1.msra.mxu0 0.0
      %410 = vmatprep.subr.mxu0 0.0
      %411 = vmatpush1.msra.mxu0 0.0
      %412 = vmatprep.subr.mxu0 0.0
      %413 = vmatpush1.msra.mxu0 0.0
      %414 = vmatprep.subr.mxu0 0.0
      %415 = vmatpush1.msra.mxu0 0.0
      %416 = vmatprep.subr.mxu0 0.0
      %417 = vmatpush1.msra.mxu0 0.0
      %418 = vmatprep.subr.mxu0 0.0
      %419 = vmatpush1.msra.mxu0 0.0
      %420 = vmatprep.subr.mxu0 0.0
      %421 = vmatpush1.msra.mxu0 0.0
      %422 = vmatprep.subr.mxu0 0.0
      %423 = vmatpush1.msra.mxu0 0.0
      %424 = vmatprep.subr.mxu0 0.0
      %425 = vmatpush1.msra.mxu0 0.0
      %426 = vmatprep.subr.mxu0 0.0
      %427 = vmatpush1.msra.mxu0 0.0
      %428 = vmatprep.subr.mxu0 0.0
      %429 = vmatpush1.msra.mxu0 0.0
      %430 = vmatprep.mubr.f32.mxu0 0.0
      %431 = vmatmul.mubr.f32.gmra.mrb[0].mxu0 %v364
      %v432 = vpop.f32.mrb[0].mxu0
      %v433 = vadd.f32 0.0, %v432
      %v434 = vpop.f32.mrb[0].mxu0
      %435 = vdwg.mxu0
      %436 = vmatprep.subr.mxu0 0.0
      %437 = vmatpush1.msra.mxu0 %v335
      %438 = vmatprep.subr.mxu0 0.0
      %439 = vmatpush1.msra.mxu0 %v340
      %440 = vmatprep.subr.mxu0 0.0
      %441 = vmatpush1.msra.mxu0 0.0
      %442 = vmatprep.subr.mxu0 0.0
      %443 = vmatpush1.msra.mxu0 0.0
      %444 = vmatprep.subr.mxu0 0.0
      %445 = vmatpush1.msra.mxu0 0.0
      %446 = vmatprep.subr.mxu0 0.0
      %447 = vmatpush1.msra.mxu0 0.0
      %448 = vmatprep.subr.mxu0 0.0
      %449 = vmatpush1.msra.mxu0 0.0
      %450 = vmatprep.subr.mxu0 0.0
      %451 = vmatpush1.msra.mxu0 0.0
      %452 = vmatprep.subr.mxu0 0.0
      %453 = vmatpush1.msra.mxu0 0.0
      %454 = vmatprep.subr.mxu0 0.0
      %455 = vmatpush1.msra.mxu0 0.0
      %456 = vmatprep.subr.mxu0 0.0
      %457 = vmatpush1.msra.mxu0 0.0
      %458 = vmatprep.subr.mxu0 0.0
      %459 = vmatpush1.msra.mxu0 0.0
      %460 = vmatprep.subr.mxu0 0.0
      %461 = vmatpush1.msra.mxu0 0.0
      %462 = vmatprep.subr.mxu0 0.0
      %463 = vmatpush1.msra.mxu0 0.0
      %464 = vmatprep.subr.mxu0 0.0
      %465 = vmatpush1.msra.mxu0 0.0
      %466 = vmatprep.subr.mxu0 0.0
      %467 = vmatpush1.msra.mxu0 0.0
      %468 = vmatprep.subr.mxu0 0.0
      %469 = vmatpush1.msra.mxu0 0.0
      %470 = vmatprep.subr.mxu0 0.0
      %471 = vmatpush1.msra.mxu0 0.0
      %472 = vmatprep.subr.mxu0 0.0
      %473 = vmatpush1.msra.mxu0 0.0
      %474 = vmatprep.subr.mxu0 0.0
      %475 = vmatpush1.msra.mxu0 0.0
      %476 = vmatprep.subr.mxu0 0.0
      %477 = vmatpush1.msra.mxu0 0.0
      %478 = vmatprep.subr.mxu0 0.0
      %479 = vmatpush1.msra.mxu0 0.0
      %480 = vmatprep.subr.mxu0 0.0
      %481 = vmatpush1.msra.mxu0 0.0
      %482 = vmatprep.subr.mxu0 0.0
      %483 = vmatpush1.msra.mxu0 0.0
      %484 = vmatprep.subr.mxu0 0.0
      %485 = vmatpush1.msra.mxu0 0.0
      %486 = vmatprep.subr.mxu0 0.0
      %487 = vmatpush1.msra.mxu0 0.0
      %488 = vmatprep.subr.mxu0 0.0
      %489 = vmatpush1.msra.mxu0 0.0
      %490 = vmatprep.subr.mxu0 0.0
      %491 = vmatpush1.msra.mxu0 0.0
      %492 = vmatprep.subr.mxu0 0.0
      %493 = vmatpush1.msra.mxu0 0.0
      %494 = vmatprep.subr.mxu0 0.0
      %495 = vmatpush1.msra.mxu0 0.0
      %496 = vmatprep.subr.mxu0 0.0
      %497 = vmatpush1.msra.mxu0 0.0
      %498 = vmatprep.subr.mxu0 0.0
      %499 = vmatpush1.msra.mxu0 0.0
      %500 = vmatprep.mubr.f32.mxu0 0.0
      %501 = vmatmul.mubr.f32.gmra.mrb[0].mxu0 %v364
      %v502 = vpop.f32.mrb[0].mxu0
      %v503 = vadd.f32 0.0, %v502
      %v504 = vpop.f32.mrb[0].mxu0
      %505 = vdwg.mxu0
      %506 = vmatprep.subr.mxu0 0.0
      %507 = vmatpush1.msra.mxu0 %v345
      %508 = vmatprep.subr.mxu0 0.0
      %509 = vmatpush1.msra.mxu0 %v350
      %510 = vmatprep.subr.mxu0 0.0
      %511 = vmatpush1.msra.mxu0 0.0
      %512 = vmatprep.subr.mxu0 0.0
      %513 = vmatpush1.msra.mxu0 0.0
      %514 = vmatprep.subr.mxu0 0.0
      %515 = vmatpush1.msra.mxu0 0.0
      %516 = vmatprep.subr.mxu0 0.0
      %517 = vmatpush1.msra.mxu0 0.0
      %518 = vmatprep.subr.mxu0 0.0
      %519 = vmatpush1.msra.mxu0 0.0
      %520 = vmatprep.subr.mxu0 0.0
      %521 = vmatpush1.msra.mxu0 0.0
      %522 = vmatprep.subr.mxu0 0.0
      %523 = vmatpush1.msra.mxu0 0.0
      %524 = vmatprep.subr.mxu0 0.0
      %525 = vmatpush1.msra.mxu0 0.0
      %526 = vmatprep.subr.mxu0 0.0
      %527 = vmatpush1.msra.mxu0 0.0
      %528 = vmatprep.subr.mxu0 0.0
      %529 = vmatpush1.msra.mxu0 0.0
      %530 = vmatprep.subr.mxu0 0.0
      %531 = vmatpush1.msra.mxu0 0.0
      %532 = vmatprep.subr.mxu0 0.0
      %533 = vmatpush1.msra.mxu0 0.0
      %534 = vmatprep.subr.mxu0 0.0
      %535 = vmatpush1.msra.mxu0 0.0
      %536 = vmatprep.subr.mxu0 0.0
      %537 = vmatpush1.msra.mxu0 0.0
      %538 = vmatprep.subr.mxu0 0.0
      %539 = vmatpush1.msra.mxu0 0.0
      %540 = vmatprep.subr.mxu0 0.0
      %541 = vmatpush1.msra.mxu0 0.0
      %542 = vmatprep.subr.mxu0 0.0
      %543 = vmatpush1.msra.mxu0 0.0
      %544 = vmatprep.subr.mxu0 0.0
      %545 = vmatpush1.msra.mxu0 0.0
      %546 = vmatprep.subr.mxu0 0.0
      %547 = vmatpush1.msra.mxu0 0.0
      %548 = vmatprep.subr.mxu0 0.0
      %549 = vmatpush1.msra.mxu0 0.0
      %550 = vmatprep.subr.mxu0 0.0
      %551 = vmatpush1.msra.mxu0 0.0
      %552 = vmatprep.subr.mxu0 0.0
      %553 = vmatpush1.msra.mxu0 0.0
      %554 = vmatprep.subr.mxu0 0.0
      %555 = vmatpush1.msra.mxu0 0.0
      %556 = vmatprep.subr.mxu0 0.0
      %557 = vmatpush1.msra.mxu0 0.0
      %558 = vmatprep.subr.mxu0 0.0
      %559 = vmatpush1.msra.mxu0 0.0
      %560 = vmatprep.subr.mxu0 0.0
      %561 = vmatpush1.msra.mxu0 0.0
      %562 = vmatprep.subr.mxu0 0.0
      %563 = vmatpush1.msra.mxu0 0.0
      %564 = vmatprep.subr.mxu0 0.0
      %565 = vmatpush1.msra.mxu0 0.0
      %566 = vmatprep.subr.mxu0 0.0
      %567 = vmatpush1.msra.mxu0 0.0
      %568 = vmatprep.subr.mxu0 0.0
      %569 = vmatpush1.msra.mxu0 0.0
      %570 = vmatprep.mubr.f32.mxu0 0.0
      %571 = vmatmul.mubr.f32.gmra.mrb[0].mxu0 %v364
      %v572 = vpop.f32.mrb[0].mxu0
      %v573 = vadd.f32 0.0, %v572
      %v574 = vpop.f32.mrb[0].mxu0
      %575 = vdwg.mxu0
      %576 = vmatprep.subr.mxu0 0.0
      %577 = vmatpush1.msra.mxu0 %v355
      %578 = vmatprep.subr.mxu0 0.0
      %579 = vmatpush1.msra.mxu0 %v360
      %580 = vmatprep.subr.mxu0 0.0
      %581 = vmatpush1.msra.mxu0 0.0
      %582 = vmatprep.subr.mxu0 0.0
      %583 = vmatpush1.msra.mxu0 0.0
      %584 = vmatprep.subr.mxu0 0.0
      %585 = vmatpush1.msra.mxu0 0.0
      %586 = vmatprep.subr.mxu0 0.0
      %587 = vmatpush1.msra.mxu0 0.0
      %588 = vmatprep.subr.mxu0 0.0
      %589 = vmatpush1.msra.mxu0 0.0
      %590 = vmatprep.subr.mxu0 0.0
      %591 = vmatpush1.msra.mxu0 0.0
      %592 = vmatprep.subr.mxu0 0.0
      %593 = vmatpush1.msra.mxu0 0.0
      %594 = vmatprep.subr.mxu0 0.0
      %595 = vmatpush1.msra.mxu0 0.0
      %596 = vmatprep.subr.mxu0 0.0
      %597 = vmatpush1.msra.mxu0 0.0
      %598 = vmatprep.subr.mxu0 0.0
      %599 = vmatpush1.msra.mxu0 0.0
      %600 = vmatprep.subr.mxu0 0.0
      %601 = vmatpush1.msra.mxu0 0.0
      %602 = vmatprep.subr.mxu0 0.0
      %603 = vmatpush1.msra.mxu0 0.0
      %604 = vmatprep.subr.mxu0 0.0
      %605 = vmatpush1.msra.mxu0 0.0
      %606 = vmatprep.subr.mxu0 0.0
      %607 = vmatpush1.msra.mxu0 0.0
      %608 = vmatprep.subr.mxu0 0.0
      %609 = vmatpush1.msra.mxu0 0.0
      %610 = vmatprep.subr.mxu0 0.0
      %611 = vmatpush1.msra.mxu0 0.0
      %612 = vmatprep.subr.mxu0 0.0
      %613 = vmatpush1.msra.mxu0 0.0
      %614 = vmatprep.subr.mxu0 0.0
      %615 = vmatpush1.msra.mxu0 0.0
      %616 = vmatprep.subr.mxu0 0.0
      %617 = vmatpush1.msra.mxu0 0.0
      %618 = vmatprep.subr.mxu0 0.0
      %619 = vmatpush1.msra.mxu0 0.0
      %620 = vmatprep.subr.mxu0 0.0
      %621 = vmatpush1.msra.mxu0 0.0
      %622 = vmatprep.subr.mxu0 0.0
      %623 = vmatpush1.msra.mxu0 0.0
      %624 = vmatprep.subr.mxu0 0.0
      %625 = vmatpush1.msra.mxu0 0.0
      %626 = vmatprep.subr.mxu0 0.0
      %627 = vmatpush1.msra.mxu0 0.0
      %628 = vmatprep.subr.mxu0 0.0
      %629 = vmatpush1.msra.mxu0 0.0
      %630 = vmatprep.subr.mxu0 0.0
      %631 = vmatpush1.msra.mxu0 0.0
      %632 = vmatprep.subr.mxu0 0.0
      %633 = vmatpush1.msra.mxu0 0.0
      %634 = vmatprep.subr.mxu0 0.0
      %635 = vmatpush1.msra.mxu0 0.0
      %636 = vmatprep.subr.mxu0 0.0
      %637 = vmatpush1.msra.mxu0 0.0
      %638 = vmatprep.subr.mxu0 0.0
      %639 = vmatpush1.msra.mxu0 0.0
      %640 = vmatprep.mubr.f32.mxu0 0.0
      %641 = vmatmul.mubr.f32.gmra.mrb[0].mxu0 %v364
      %v642 = vpop.f32.mrb[0].mxu0
      %v643 = vadd.f32 0.0, %v642
      %v644 = vpop.f32.mrb[0].mxu0
      %645 = vdwg.mxu0
      %v646 = vsel %vm233, %v222, 0.0
      %647 = vadd.xlane.f32.xlu0 %v646
      %v648 = vpop.xlane.xlu0 %647
      %vm649 = vcmask 64512
      %v650 = vsel %vm649, %v223, 0.0
      %v651 = vsel %vm649, %v224, 0.0
      %v652 = vadd.f32 %v650, %v651
      %v653 = vrot.slane %v652, 4
      %v654 = vadd.f32 %v652, %v653
      %v655 = vrot.slane %v654, 2
      %v656 = vadd.f32 %v654, %v655
      %v657 = vrot.slane %v656, 1
      %v658 = vadd.f32 %v656, %v657
      %v659 = vmul.f32 %v648, %v658
      %vm660 = vcmp.gt.f32.partialorder %v659, 0.25
      %v661 = vsel %vm660, 1, 0
      %vm662 = vcmp.eq.s32.totalorder %v661, 1
      %v663 = vsel %vm662, %v433, 0.5
      %v664 = vsel %vm662, %v503, 0.5
      %v665 = vsel %vm662, %v573, 0.5
      %v666 = vsel %vm662, %v643, 0.5
      %667 = vst.msk [vmem:[%s221] sm:$0xff] %vm649, %v663
      %668 = vst.msk [vmem:[%s221 + $0x8] sm:$0xff] %vm649, %v664
      %669 = vst.msk [vmem:[%s221 + $0x10] sm:$0xff] %vm649, %v665
      %670 = vst.msk [vmem:[%s221 + $0x18] sm:$0xff] %vm649, %v666
      %p671 = scmp.lt.s32.totalorder %s21, 2
      %s672 = scalar_select %p671, %s21, 2
      %s673 = smul.addr %s672, 4
      %s674 = smul.addr %s673, 8
      %s675 = scalar_lea.vmem %s4, %s674
      // Predicated region
      $region33: #{crop_and_resize.1} parent=31 // pred_check
        %p676 = pneg %p119
      $region34: #{crop_and_resize.1} parent=31 // pred_check_branch
        %678 = sbr.rel (%p676) target = $region36
      $region35: #{crop_and_resize.1} parent=31 // pred_region
        _
      $region36: #{crop_and_resize.1} parent=31 // pred_fallthru
        _
    $region32: #{crop_and_resize.1} parent=5 // pred_fallthru
      _
    %p679 = scmp.le.s32.totalorder 2, %s16
    // Predicated region
    $region37: #{crop_and_resize.1} parent=5 // pred_check
      %p680 = pneg %p679
    $region38: #{crop_and_resize.1} parent=5 // pred_check_branch
      %682 = sbr.rel (%p680) target = $region40
    $region39: #{crop_and_resize.1} parent=5 // pred_region
      %s683 = ssub.s32 %s16, 2
      // Predicated region
      $region41: #{crop_and_resize.1} parent=39 // pred_check
        %p684 = pneg %p125
      $region42: #{crop_and_resize.1} parent=39 // pred_check_branch
        %686 = sbr.rel (%p684) target = $region44
      $region43: #{crop_and_resize.1} parent=39 // pred_region
        %p687 = scmp.lt.s32.totalorder %s22, 2
        %s688 = scalar_select %p687, %s22, 2
        %s689 = smul.addr %s688, 4
        %s690 = smul.addr %s689, 8
        %s691 = scalar_lea.vmem %s4, %s690
      $region44: #{crop_and_resize.1} parent=39 // pred_fallthru
        _
    $region40: #{crop_and_resize.1} parent=5 // pred_fallthru
      _
  $region6: #{crop_and_resize.1} parent=0 // loop_footer
    %s20 = sadd.s32 1, %s16
  $region7: #{crop_and_resize.1} parent=0 // loop_footer_branch
    %15 = sbr.rel target = $region3
  $region8: #{crop_and_resize.1} parent=0 // loop_exit
    _

</llo_original>
